<compile_context>
chip_gen: v6e
topology: v6e:2x2x1
jax: 0.10.0
libtpu: 0.0.40
codegen_flags: <defaults>
</compile_context>

<pallas_src>
import jax
import jax.numpy as jnp
from jax.experimental import pallas as pl
from jax.experimental.pallas import tpu as pltpu


def _round_up(x, m):
    return ((x + m - 1) // m) * m


def _pack_params(conv_weights, conv_biases, fc_weight, fc_bias, rows_per_block):
    """Pack every parameter into one (P, W) f32 buffer + static row offsets.

    Layout (each piece starts on an 8-row boundary so kernel slices are sublane
    aligned):  [w_0 | b_0 | w_1 | b_1 | ... | head (rows_per_block, c_last+1)].
    Blocks are sample aligned, so row r of a block belongs to joint (r % 23); the
    per-joint fc head is therefore pre-expanded to one (weights|bias) row per
    block row by tiling fc_weight/fc_bias rows_per_block // 23 times.
    """
    num_joints, c_last = fc_weight.shape
    width = max([w.shape[1] for w in conv_weights] + [c_last + 1])

    pieces, r = [], 0

    def emit(arr):
        nonlocal r
        arr = jnp.asarray(arr, jnp.float32)
        pieces.append(jnp.pad(arr, ((0, 0), (0, width - arr.shape[1]))))
        off = r
        r += arr.shape[0]
        pad = (-r) % 8
        if pad:
            pieces.append(jnp.zeros((pad, width), jnp.float32))
            r += pad
        return off

    conv_offsets = []
    for w, b in zip(conv_weights, conv_biases):
        w_off = emit(w)
        b_off = emit(b.reshape(1, -1))
        conv_offsets.append((w_off, b_off))

    reps = rows_per_block // num_joints
    fcw_rows = jnp.tile(jnp.asarray(fc_weight, jnp.float32), (reps, 1))              # (R, c_last)
    fcb_rows = jnp.tile(jnp.asarray(fc_bias, jnp.float32).reshape(-1, 1), (reps, 1))  # (R, 1)
    head_off = emit(jnp.concatenate([fcw_rows, fcb_rows], axis=1))

    packed = jnp.concatenate(pieces, axis=0)  # (P, width)
    return packed, conv_offsets, head_off


def _make_kernel(channels, conv_offsets, head_off, head_rows):
    """Fused kernel: shared 1x1-conv chain + per-joint linear heads, on flat rows."""
    n_conv = len(channels) - 2
    c_last = channels[-2]

    def kernel(x_ref, p_ref, d_ref, f_ref):
        # x_ref: (R, C0) rows = (sample, joint) in natural b-major / j-minor order.
        h = x_ref[...].astype(jnp.float32)
        for l in range(n_conv):
            c_in, c_out = channels[l], channels[l + 1]
            w_off, b_off = conv_offsets[l]
            w = p_ref[w_off:w_off + c_in, 0:c_out]        # (c_in, c_out) shared weights
            b = p_ref[b_off:b_off + 1, 0:c_out]           # (1, c_out)
            # ONE MXU matmul per layer over all (sample, joint) rows.
            h = jnp.dot(h, w, preferred_element_type=jnp.float32) + b
            # NOTE: the reference module has NO activation / dropout between convs.
        f_ref[...] = h.astype(f_ref.dtype)                # (R, c_last) contiguous writeback

        # Per-joint C_last->1 heads: row-periodic weights (period 23), VPU multiply
        # + lane reduction (avoids 23 N=1 MXU matmuls).
        fcw = p_ref[head_off:head_off + head_rows, 0:c_last]          # (R, c_last)
        fcb = p_ref[head_off:head_off + head_rows, c_last:c_last + 1]  # (R, 1)
        d_ref[...] = (jnp.sum(h * fcw, axis=-1, keepdims=True) + fcb).astype(d_ref.dtype)

    return kernel


def pose_discriminator_forward(inputs, conv_weights, conv_biases, fc_weight, fc_bias,
                               *, block_rows=1472):
    """Fused PoseDiscriminator forward.

    inputs:       (B, 23, C0) float32 per-joint features
    conv_weights: list of (c_in, c_out) arrays (transposed vs PyTorch Conv2d (out,in,1,1))
    conv_biases:  list of (c_out,) arrays
    fc_weight:    (23, C_last)  (row j = fc_layer[j].weight.squeeze())
    fc_bias:      (23,)
    Returns (scores (B, 23), internal_outputs (B, C_last, 1, 23)) — same as PyTorch.
    """
    B, J, C0 = inputs.shape
    channels = [C0] + [w.shape[1] for w in conv_weights] + [1]
    assert channels[-1] == 1, "the neuron count of the last layer must be 1"
    c_last = channels[-2]
    assert fc_weight.shape == (J, c_last)

    # Row-block policy: granule = 8 sublanes * 23 joints => sample + tile aligned.
    granule = 8 * J
    n_rows = B * J
    n_blocks = max(1, pl.cdiv(n_rows, block_rows))
    if n_rows >= 2 * granule:
        n_blocks = max(n_blocks, 2)   # v7x: give the "parallel" axis >= 2 steps (both TCs)
    R = _round_up(pl.cdiv(n_rows, n_blocks), granule)  # even split -> padding <= ~1 granule
    grid = pl.cdiv(n_rows, R)
    n_rows_pad = grid * R

    # Natural contiguous layout: (B, 23, C0) -> (B*23, C0) is a free reshape (no HBM copy).
    x2d = inputs.reshape(n_rows, C0).astype(jnp.float32)
    if n_rows_pad != n_rows:
        x2d = jnp.pad(x2d, ((0, n_rows_pad - n_rows), (0, 0)))

    packed, conv_offsets, head_off = _pack_params(
        conv_weights, conv_biases, fc_weight, fc_bias, R)
    P, W = packed.shape

    kernel = _make_kernel(channels, conv_offsets, head_off, R)

    conv_macs = sum(channels[i] * channels[i + 1] for i in range(len(channels) - 2))
    cost = pl.CostEstimate(
        flops=2 * n_rows_pad * (conv_macs + c_last),
        transcendentals=0,
        bytes_accessed=4 * (n_rows_pad * (C0 + c_last + 1) + P * W),
    )

    scores2d, feat2d = pl.pallas_call(
        kernel,
        out_shape=(jax.ShapeDtypeStruct((n_rows_pad, 1), jnp.float32),
                   jax.ShapeDtypeStruct((n_rows_pad, c_last), jnp.float32)),
        grid=(grid,),
        in_specs=[
            pl.BlockSpec((R, C0), lambda i: (i, 0)),   # activations: tiled over rows
            pl.BlockSpec((P, W), lambda i: (0, 0)),    # packed params: VMEM-resident
        ],
        out_specs=(
            pl.BlockSpec((R, 1), lambda i: (i, 0)),
            pl.BlockSpec((R, c_last), lambda i: (i, 0)),
        ),
        compiler_params=pltpu.CompilerParams(dimension_semantics=("parallel",)),
        cost_estimate=cost,
    )(x2d, packed)

    scores = scores2d[:n_rows, 0].reshape(B, J)                           # free reshape
    feat = feat2d[:n_rows].reshape(B, J, c_last)                          # free reshape
    # Only remaining XLA op on the big tensor: the C<->J swap demanded by the
    # (B, C_last, 1, 23) return layout (see TODO(synk) in the header comment).
    internal = jnp.transpose(feat, (0, 2, 1))[:, :, None, :]
    return scores, internal


def init_params(channels, key, num_joints=23):
    """Synthetic init matching nn.Conv2d(1x1)/nn.Linear shapes (weights pre-transposed)."""
    conv_w, conv_b = [], []
    for i in range(len(channels) - 2):
        c_in, c_out = channels[i], channels[i + 1]
        key, kw, kb = jax.random.split(key, 3)
        bound = 1.0 / (c_in ** 0.5)
        conv_w.append(jax.random.uniform(kw, (c_in, c_out), jnp.float32, -bound, bound))
        conv_b.append(jax.random.uniform(kb, (c_out,), jnp.float32, -bound, bound))
    c_last = channels[-2]
    key, kw, kb = jax.random.split(key, 3)
    bound = 1.0 / (c_last ** 0.5)
    fc_w = jax.random.uniform(kw, (num_joints, c_last), jnp.float32, -bound, bound)
    fc_b = jax.random.uniform(kb, (num_joints,), jnp.float32, -bound, bound)
    return conv_w, conv_b, fc_w, fc_b


def reference_forward(inputs, conv_weights, conv_biases, fc_weight, fc_bias):
    """Pure-JAX reference mirroring the PyTorch forward exactly."""
    h = inputs  # (B, J, C0); 1x1 convs over the joint axis == shared per-joint linears
    for w, b in zip(conv_weights, conv_biases):
        h = jnp.einsum('bjc,cd->bjd', h, w, precision='highest') + b
    internal = jnp.transpose(h, (0, 2, 1))[:, :, None, :]                  # (B, C_last, 1, J)
    scores = jnp.einsum('bjc,jc->bj', h, fc_weight, precision='highest') + fc_bias[None, :]
    return scores, internal


if __name__ == "__main__":
    # Standard SMPL/HMR pose-discriminator config: 9 rotmat features per joint,
    # two shared 1x1-conv layers of width 32, 23 per-joint scalar heads.
    channels = [9, 32, 32, 1]
    num_joints = 23

    key = jax.random.PRNGKey(0)
    conv_w, conv_b, fc_w, fc_b = init_params(channels, key, num_joints)

    ok = True
    for batch in (8, 10):   # 10 exercises the row-padding / non-aligned path
        key, kx = jax.random.split(key)
        x = jax.random.normal(kx, (batch, num_joints, channels[0]), jnp.float32)

        scores, internal = pose_discriminator_forward(x, conv_w, conv_b, fc_w, fc_b)
        scores = jax.block_until_ready(scores)
        internal = jax.block_until_ready(internal)

        ref_scores, ref_internal = reference_forward(x, conv_w, conv_b, fc_w, fc_b)
        assert scores.shape == (batch, num_joints), scores.shape
        assert internal.shape == (batch, channels[-2], 1, num_joints), internal.shape
        ok &= bool(jnp.allclose(scores, ref_scores, atol=1e-4, rtol=1e-4))
        ok &= bool(jnp.allclose(internal, ref_internal, atol=1e-4, rtol=1e-4))

    assert ok
    print("KERNEL_OK")
</pallas_src>

<mosaic_0001>
module attributes {stable_mosaic.version = 11 : i64} {
  func.func @kernel(%arg0: i32, %arg1: memref<184x9xf32, #tpu.memory_space<vmem>>, %arg2: memref<248x33xf32, #tpu.memory_space<vmem>>, %arg3: memref<184x1xf32, #tpu.memory_space<vmem>>, %arg4: memref<184x32xf32, #tpu.memory_space<vmem>>) attributes {dimension_semantics = [#tpu.dimension_semantics<parallel>], iteration_bounds = array<i64: 1>, scalar_prefetch = 0 : i64, scratch_operands = 0 : i64, tpu.core_type = #tpu.core_type<tc>, window_params = [{transform_indices = @transform_0, window_bounds = array<i64: 184, 9>}, {pipeline_mode = #tpu.pipeline_mode<synchronous>, transform_indices = @transform_1, window_bounds = array<i64: 248, 33>}, {transform_indices = @transform_2, window_bounds = array<i64: 184, 1>}, {transform_indices = @transform_3, window_bounds = array<i64: 184, 32>}]} {
    %c0 = arith.constant 0 : index
    %c0_0 = arith.constant 0 : index
    %0 = vector.load %arg1[%c0, %c0_0] : memref<184x9xf32, #tpu.memory_space<vmem>>, vector<184x9xf32>
    %c0_1 = arith.constant 0 : index
    %c0_2 = arith.constant 0 : index
    %1 = vector.load %arg2[%c0_1, %c0_2] : memref<248x33xf32, #tpu.memory_space<vmem>>, vector<9x32xf32>
    %c16 = arith.constant 16 : index
    %c0_3 = arith.constant 0 : index
    %2 = vector.load %arg2[%c16, %c0_3] : memref<248x33xf32, #tpu.memory_space<vmem>>, vector<1x32xf32>
    %cst = arith.constant dense<0.000000e+00> : vector<184x32xf32>
    %3 = tpu.matmul %0, %1, %cst {dimension_numbers = #tpu.dot_dimension_numbers<[1], [0], [0], [1], [0, 0, 1, 1], [], []>} : vector<184x9xf32>, vector<9x32xf32>, vector<184x32xf32> -> vector<184x32xf32>
    %4 = vector.broadcast %2 : vector<1x32xf32> to vector<184x32xf32>
    %5 = arith.addf %3, %4 : vector<184x32xf32>
    %c24 = arith.constant 24 : index
    %c0_4 = arith.constant 0 : index
    %6 = vector.load %arg2[%c24, %c0_4] : memref<248x33xf32, #tpu.memory_space<vmem>>, vector<32x32xf32>
    %c56 = arith.constant 56 : index
    %c0_5 = arith.constant 0 : index
    %7 = vector.load %arg2[%c56, %c0_5] : memref<248x33xf32, #tpu.memory_space<vmem>>, vector<1x32xf32>
    %cst_6 = arith.constant dense<0.000000e+00> : vector<184x32xf32>
    %8 = tpu.matmul %5, %6, %cst_6 {dimension_numbers = #tpu.dot_dimension_numbers<[1], [0], [0], [1], [0, 0, 1, 1], [], []>} : vector<184x32xf32>, vector<32x32xf32>, vector<184x32xf32> -> vector<184x32xf32>
    %9 = vector.broadcast %7 : vector<1x32xf32> to vector<184x32xf32>
    %10 = arith.addf %8, %9 : vector<184x32xf32>
    %c0_7 = arith.constant 0 : index
    %c0_8 = arith.constant 0 : index
    %11 = vector.load %arg4[%c0_7, %c0_8] : memref<184x32xf32, #tpu.memory_space<vmem>>, vector<184x32xf32>
    tpu.vector_store %arg4[%c0_7, %c0_8], %10 {strides = array<i32>} : memref<184x32xf32, #tpu.memory_space<vmem>>, vector<184x32xf32>,
    %c64 = arith.constant 64 : index
    %c0_9 = arith.constant 0 : index
    %12 = vector.load %arg2[%c64, %c0_9] : memref<248x33xf32, #tpu.memory_space<vmem>>, vector<184x32xf32>
    %c64_10 = arith.constant 64 : index
    %c32 = arith.constant 32 : index
    %13 = vector.load %arg2[%c64_10, %c32] : memref<248x33xf32, #tpu.memory_space<vmem>>, vector<184x1xf32>
    %14 = arith.mulf %10, %12 : vector<184x32xf32>
    %cst_11 = arith.constant dense<0.000000e+00> : vector<184xf32>
    %15 = vector.multi_reduction <add>, %14, %cst_11 [1] : vector<184x32xf32> to vector<184xf32>
    %16 = vector.shape_cast %15 : vector<184xf32> to vector<184x1xf32>
    %17 = arith.addf %16, %13 : vector<184x1xf32>
    %c0_12 = arith.constant 0 : index
    %c0_13 = arith.constant 0 : index
    %18 = vector.load %arg3[%c0_12, %c0_13] : memref<184x1xf32, #tpu.memory_space<vmem>>, vector<184x1xf32>
    tpu.vector_store %arg3[%c0_12, %c0_13], %17 {strides = array<i32>} : memref<184x1xf32, #tpu.memory_space<vmem>>, vector<184x1xf32>,
    return
  }
  func.func @transform_0(%arg0: i32) -> (i32, i32) {
    %c0_i32 = arith.constant 0 : i32
    %c0_i32_0 = arith.constant 0 : i32
    return %arg0, %c0_i32 : i32, i32
  }
  func.func @transform_1(%arg0: i32) -> (i32, i32) {
    %c0_i32 = arith.constant 0 : i32
    %c0_i32_0 = arith.constant 0 : i32
    %c0_i32_1 = arith.constant 0 : i32
    return %c0_i32, %c0_i32_0 : i32, i32
  }
  func.func @transform_2(%arg0: i32) -> (i32, i32) {
    %c0_i32 = arith.constant 0 : i32
    %c0_i32_0 = arith.constant 0 : i32
    return %arg0, %c0_i32 : i32, i32
  }
  func.func @transform_3(%arg0: i32) -> (i32, i32) {
    %c0_i32 = arith.constant 0 : i32
    %c0_i32_0 = arith.constant 0 : i32
    return %arg0, %c0_i32 : i32, i32
  }
}

</mosaic_0001>

<llo_original>
// kernel: tpu_custom_call.1
$region0: #{tpu_custom_call.1}
  #allocation0 [shape = 'u32[]', space=smem, size = 0x4, offset = 0x4, fixed_abs, tag = 'smem constant byte address 0x4 - core index']
  #allocation1 [shape = 'u32[144,128]{1,0:T(1,128)}', space=vmem, size = 0x12000, scoped, tag = 'internal scratch']
  %s0 = inlined_call_operand.vmem [shape: f32[184,9], index: 0, kind: input, shape index: {}]
  %s1 = inlined_call_operand.vmem [shape: f32[248,33], index: 1, kind: input, shape index: {}]
  %s2 = inlined_call_operand.vmem [shape: f32[184,1], index: 2, kind: output, shape index: {0}]
  %s3 = inlined_call_operand.vmem [shape: f32[184,32], index: 3, kind: output, shape index: {1}]
  %4 = xla_tuple %s2, %s3
  %s5 = sld [smem:[#allocation0]]
  $region26: #{tpu_custom_call.1} parent=0
    _
  %s7 = ssub.s32 1, %s5
  %s8 = scalar_select 0, %s7, %s5
  // Predicated region
  $region2: #{tpu_custom_call.1} parent=0 // pred_check
    _
  $region3: #{tpu_custom_call.1} parent=0 // pred_check_branch
    %10 = sbr.rel (0) target = $region5
  $region4: #{tpu_custom_call.1} parent=0 // pred_region
    _
  $region5: #{tpu_custom_call.1} parent=0 // pred_fallthru
    _
  // Predicated region
  $region6: #{tpu_custom_call.1} parent=0 // pred_check
    _
  $region7: #{tpu_custom_call.1} parent=0 // pred_check_branch
    %12 = sbr.rel (0) target = $region9
  $region8: #{tpu_custom_call.1} parent=0 // pred_region
    _
  $region9: #{tpu_custom_call.1} parent=0 // pred_fallthru
    _
  %v13 = vld [vmem:[%s0] sm:$0xff]
  %v14 = vld [vmem:[%s0 + $0x8] sm:$0xff]
  %v15 = vld [vmem:[%s0 + $0x10] sm:$0xff]
  %v16 = vld [vmem:[%s0 + $0x18] sm:$0xff]
  %v17 = vld [vmem:[%s0 + $0x20] sm:$0xff]
  %v18 = vld [vmem:[%s0 + $0x28] sm:$0xff]
  %v19 = vld [vmem:[%s0 + $0x30] sm:$0xff]
  %v20 = vld [vmem:[%s0 + $0x38] sm:$0xff]
  %v21 = vld [vmem:[%s0 + $0x40] sm:$0xff]
  %v22 = vld [vmem:[%s0 + $0x48] sm:$0xff]
  %v23 = vld [vmem:[%s0 + $0x50] sm:$0xff]
  %v24 = vld [vmem:[%s0 + $0x58] sm:$0xff]
  %v25 = vld [vmem:[%s0 + $0x60] sm:$0xff]
  %v26 = vld [vmem:[%s0 + $0x68] sm:$0xff]
  %v27 = vld [vmem:[%s0 + $0x70] sm:$0xff]
  %v28 = vld [vmem:[%s0 + $0x78] sm:$0xff]
  %v29 = vld [vmem:[%s0 + $0x80] sm:$0xff]
  %v30 = vld [vmem:[%s0 + $0x88] sm:$0xff]
  %v31 = vld [vmem:[%s0 + $0x90] sm:$0xff]
  %v32 = vld [vmem:[%s0 + $0x98] sm:$0xff]
  %v33 = vld [vmem:[%s0 + $0xa0] sm:$0xff]
  %v34 = vld [vmem:[%s0 + $0xa8] sm:$0xff]
  %v35 = vld [vmem:[%s0 + $0xb0] sm:$0xff]
  %v36 = vld [vmem:[%s1] sm:$0xff]
  %v37 = vld [vmem:[%s1 + $0x8] sm:$0x1]
  %v38 = vld [vmem:[%s1 + $0x10] sm:$0x1]
  %v39 = vlaneseq
  %v40 = vshrl.u32 %v39, 7
  %v41 = vsub.s32 0, %v40
  %v42 = vrot.slane %v38, %v41
  %vm43 = vcmask 72704
  %v45 = vsel %vm43, %v13, 0
  %v48 = vsel %vm43, %v14, 0
  %v51 = vsel %vm43, %v15, 0
  %v54 = vsel %vm43, %v16, 0
  %v57 = vsel %vm43, %v17, 0
  %v60 = vsel %vm43, %v18, 0
  %v63 = vsel %vm43, %v19, 0
  %v66 = vsel %vm43, %v20, 0
  %v69 = vsel %vm43, %v21, 0
  %v72 = vsel %vm43, %v22, 0
  %v75 = vsel %vm43, %v23, 0
  %v78 = vsel %vm43, %v24, 0
  %v81 = vsel %vm43, %v25, 0
  %v84 = vsel %vm43, %v26, 0
  %v87 = vsel %vm43, %v27, 0
  %v90 = vsel %vm43, %v28, 0
  %v93 = vsel %vm43, %v29, 0
  %v96 = vsel %vm43, %v30, 0
  %v99 = vsel %vm43, %v31, 0
  %v102 = vsel %vm43, %v32, 0
  %v105 = vsel %vm43, %v33, 0
  %v108 = vsel %vm43, %v34, 0
  %v111 = vsel %vm43, %v35, 0
  %vm113 = vcmask 1040384
  %v115 = vsel %vm113, %v37, 0
  %117 = vmatprep.subr.mxu0 0.0
  %118 = vmatpush1.msra.mxu0 0.0
  %119 = vmatprep.subr.mxu0 0.0
  %120 = vmatpush1.msra.mxu0 0.0
  %121 = vmatprep.subr.mxu0 0.0
  %122 = vmatpush1.msra.mxu0 0.0
  %123 = vmatprep.subr.mxu0 0.0
  %124 = vmatpush1.msra.mxu0 0.0
  %125 = vmatprep.subr.mxu0 0.0
  %126 = vmatpush1.msra.mxu0 0.0
  %127 = vmatprep.subr.mxu0 0.0
  %128 = vmatpush1.msra.mxu0 0.0
  %129 = vmatprep.subr.mxu0 0.0
  %130 = vmatpush1.msra.mxu0 0.0
  %131 = vmatprep.subr.mxu0 0.0
  %132 = vmatpush1.msra.mxu0 0.0
  %133 = vmatprep.subr.mxu0 0.0
  %134 = vmatpush1.msra.mxu0 0.0
  %135 = vmatprep.subr.mxu0 0.0
  %136 = vmatpush1.msra.mxu0 0.0
  %137 = vmatprep.subr.mxu0 0.0
  %138 = vmatpush1.msra.mxu0 0.0
  %139 = vmatprep.subr.mxu0 0.0
  %140 = vmatpush1.msra.mxu0 0.0
  %141 = vmatprep.subr.mxu0 0.0
  %142 = vmatpush1.msra.mxu0 0.0
  %143 = vmatprep.subr.mxu0 0.0
  %144 = vmatpush1.msra.mxu0 0.0
  %145 = vmatprep.subr.mxu0 0.0
  %146 = vmatpush1.msra.mxu0 %v115
  %147 = vmatprep.subr.mxu0 0.0
  %148 = vmatpush1.msra.mxu0 %v36
  %149 = vmatprep.subr.mxu0 0.0
  %150 = vmatpush2.msra.mxu0 0.0
  %151 = vmatprep.subr.mxu0 0.0
  %152 = vmatpush2.msra.mxu0 0.0
  %153 = vmatprep.subr.mxu0 0.0
  %154 = vmatpush2.msra.mxu0 0.0
  %155 = vmatprep.subr.mxu0 0.0
  %156 = vmatpush2.msra.mxu0 0.0
  %157 = vmatprep.subr.mxu0 0.0
  %158 = vmatpush2.msra.mxu0 0.0
  %159 = vmatprep.subr.mxu0 0.0
  %160 = vmatpush2.msra.mxu0 0.0
  %161 = vmatprep.subr.mxu0 0.0
  %162 = vmatpush2.msra.mxu0 0.0
  %163 = vmatprep.subr.mxu0 0.0
  %164 = vmatpush2.msra.mxu0 0.0
  %165 = vmatprep.subr.mxu0 0.0
  %166 = vmatpush2.msra.mxu0 0.0
  %167 = vmatprep.subr.mxu0 0.0
  %168 = vmatpush2.msra.mxu0 0.0
  %169 = vmatprep.subr.mxu0 0.0
  %170 = vmatpush2.msra.mxu0 0.0
  %171 = vmatprep.subr.mxu0 0.0
  %172 = vmatpush2.msra.mxu0 0.0
  %173 = vmatprep.subr.mxu0 0.0
  %174 = vmatpush2.msra.mxu0 0.0
  %175 = vmatprep.subr.mxu0 0.0
  %176 = vmatpush2.msra.mxu0 0.0
  %177 = vmatprep.subr.mxu0 0.0
  %178 = vmatpush2.msra.mxu0 0.0
  %179 = vmatprep.subr.mxu0 0.0
  %180 = vmatpush2.msra.mxu0 0.0
  %181 = vmatprep.mubr.f32.mxu0 0.0
  %182 = vmatmul.mubr.f32.gmra.mxu0 %v45
  %v183 = vpop.f32.mrf.mxu0
  %v184 = vadd.f32 %v42, %v183
  %v185 = vpop.f32.mrf.mxu0
  %186 = vmatprep.mubr.f32.mxu0 0.0
  %187 = vmatmul.mubr.f32.gmra.mxu0 %v48
  %v188 = vpop.f32.mrf.mxu0
  %v189 = vadd.f32 %v42, %v188
  %v190 = vpop.f32.mrf.mxu0
  %191 = vmatprep.mubr.f32.mxu0 0.0
  %192 = vmatmul.mubr.f32.gmra.mxu0 %v51
  %v193 = vpop.f32.mrf.mxu0
  %v194 = vadd.f32 %v42, %v193
  %v195 = vpop.f32.mrf.mxu0
  %196 = vmatprep.mubr.f32.mxu0 0.0
  %197 = vmatmul.mubr.f32.gmra.mxu0 %v54
  %v198 = vpop.f32.mrf.mxu0
  %v199 = vadd.f32 %v42, %v198
  %v200 = vpop.f32.mrf.mxu0
  %201 = vmatprep.mubr.f32.mxu0 0.0
  %202 = vmatmul.mubr.f32.gmra.mxu0 %v57
  %v203 = vpop.f32.mrf.mxu0
  %v204 = vadd.f32 %v42, %v203
  %v205 = vpop.f32.mrf.mxu0
  %206 = vmatprep.mubr.f32.mxu0 0.0
  %207 = vmatmul.mubr.f32.gmra.mxu0 %v60
  %v208 = vpop.f32.mrf.mxu0
  %v209 = vadd.f32 %v42, %v208
  %v210 = vpop.f32.mrf.mxu0
  %211 = vmatprep.mubr.f32.mxu0 0.0
  %212 = vmatmul.mubr.f32.gmra.mxu0 %v63
  %v213 = vpop.f32.mrf.mxu0
  %v214 = vadd.f32 %v42, %v213
  %v215 = vpop.f32.mrf.mxu0
  %216 = vmatprep.mubr.f32.mxu0 0.0
  %217 = vmatmul.mubr.f32.gmra.mxu0 %v66
  %v218 = vpop.f32.mrf.mxu0
  %v219 = vadd.f32 %v42, %v218
  %v220 = vpop.f32.mrf.mxu0
  %221 = vmatprep.mubr.f32.mxu0 0.0
  %222 = vmatmul.mubr.f32.gmra.mxu0 %v69
  %v223 = vpop.f32.mrf.mxu0
  %v224 = vadd.f32 %v42, %v223
  %v225 = vpop.f32.mrf.mxu0
  %226 = vmatprep.mubr.f32.mxu0 0.0
  %227 = vmatmul.mubr.f32.gmra.mxu0 %v72
  %v228 = vpop.f32.mrf.mxu0
  %v229 = vadd.f32 %v42, %v228
  %v230 = vpop.f32.mrf.mxu0
  %231 = vmatprep.mubr.f32.mxu0 0.0
  %232 = vmatmul.mubr.f32.gmra.mxu0 %v75
  %v233 = vpop.f32.mrf.mxu0
  %v234 = vadd.f32 %v42, %v233
  %v235 = vpop.f32.mrf.mxu0
  %236 = vmatprep.mubr.f32.mxu0 0.0
  %237 = vmatmul.mubr.f32.gmra.mxu0 %v78
  %v238 = vpop.f32.mrf.mxu0
  %v239 = vadd.f32 %v42, %v238
  %v240 = vpop.f32.mrf.mxu0
  %241 = vmatprep.mubr.f32.mxu0 0.0
  %242 = vmatmul.mubr.f32.gmra.mxu0 %v81
  %v243 = vpop.f32.mrf.mxu0
  %v244 = vadd.f32 %v42, %v243
  %v245 = vpop.f32.mrf.mxu0
  %246 = vmatprep.mubr.f32.mxu0 0.0
  %247 = vmatmul.mubr.f32.gmra.mxu0 %v84
  %v248 = vpop.f32.mrf.mxu0
  %v249 = vadd.f32 %v42, %v248
  %v250 = vpop.f32.mrf.mxu0
  %251 = vmatprep.mubr.f32.mxu0 0.0
  %252 = vmatmul.mubr.f32.gmra.mxu0 %v87
  %v253 = vpop.f32.mrf.mxu0
  %v254 = vadd.f32 %v42, %v253
  %v255 = vpop.f32.mrf.mxu0
  %256 = vmatprep.mubr.f32.mxu0 0.0
  %257 = vmatmul.mubr.f32.gmra.mxu0 %v90
  %v258 = vpop.f32.mrf.mxu0
  %v259 = vadd.f32 %v42, %v258
  %v260 = vpop.f32.mrf.mxu0
  %261 = vmatprep.mubr.f32.mxu0 0.0
  %262 = vmatmul.mubr.f32.gmra.mxu0 %v93
  %v263 = vpop.f32.mrf.mxu0
  %v264 = vadd.f32 %v42, %v263
  %v265 = vpop.f32.mrf.mxu0
  %266 = vmatprep.mubr.f32.mxu0 0.0
  %267 = vmatmul.mubr.f32.gmra.mxu0 %v96
  %v268 = vpop.f32.mrf.mxu0
  %v269 = vadd.f32 %v42, %v268
  %v270 = vpop.f32.mrf.mxu0
  %271 = vmatprep.mubr.f32.mxu0 0.0
  %272 = vmatmul.mubr.f32.gmra.mxu0 %v99
  %v273 = vpop.f32.mrf.mxu0
  %v274 = vadd.f32 %v42, %v273
  %v275 = vpop.f32.mrf.mxu0
  %276 = vmatprep.mubr.f32.mxu0 0.0
  %277 = vmatmul.mubr.f32.gmra.mxu0 %v102
  %v278 = vpop.f32.mrf.mxu0
  %v279 = vadd.f32 %v42, %v278
  %v280 = vpop.f32.mrf.mxu0
  %281 = vmatprep.mubr.f32.mxu0 0.0
  %282 = vmatmul.mubr.f32.gmra.mxu0 %v105
  %v283 = vpop.f32.mrf.mxu0
  %v284 = vadd.f32 %v42, %v283
  %v285 = vpop.f32.mrf.mxu0
  %286 = vmatprep.mubr.f32.mxu0 0.0
  %287 = vmatmul.mubr.f32.gmra.mxu0 %v108
  %v288 = vpop.f32.mrf.mxu0
  %v289 = vadd.f32 %v42, %v288
  %v290 = vpop.f32.mrf.mxu0
  %291 = vmatprep.mubr.f32.mxu0 0.0
  %292 = vmatmul.mubr.f32.gmra.mxu0 %v111
  %v293 = vpop.f32.mrf.mxu0
  %v294 = vadd.f32 %v42, %v293
  %v295 = vpop.f32.mrf.mxu0
  %296 = vdwg.mxu0
  %v297 = vld [vmem:[%s1 + $0x18] sm:$0xff]
  %v298 = vld [vmem:[%s1 + $0x20] sm:$0xff]
  %v299 = vld [vmem:[%s1 + $0x28] sm:$0xff]
  %v300 = vld [vmem:[%s1 + $0x30] sm:$0xff]
  %v301 = vld [vmem:[%s1 + $0x38] sm:$0x1]
  %v302 = vlaneseq
  %v303 = vshrl.u32 %v302, 7
  %v304 = vsub.s32 0, %v303
  %v305 = vrot.slane %v301, %v304
  %vm306 = vcmask 261120
  %v308 = vsel %vm306, %v184, 0
  %v311 = vsel %vm306, %v189, 0
  %v314 = vsel %vm306, %v194, 0
  %v317 = vsel %vm306, %v199, 0
  %v320 = vsel %vm306, %v204, 0
  %v323 = vsel %vm306, %v209, 0
  %v326 = vsel %vm306, %v214, 0
  %v329 = vsel %vm306, %v219, 0
  %v332 = vsel %vm306, %v224, 0
  %v335 = vsel %vm306, %v229, 0
  %v338 = vsel %vm306, %v234, 0
  %v341 = vsel %vm306, %v239, 0
  %v344 = vsel %vm306, %v244, 0
  %v347 = vsel %vm306, %v249, 0
  %v350 = vsel %vm306, %v254, 0
  %v353 = vsel %vm306, %v259, 0
  %v356 = vsel %vm306, %v264, 0
  %v359 = vsel %vm306, %v269, 0
  %v362 = vsel %vm306, %v274, 0
  %v365 = vsel %vm306, %v279, 0
  %v368 = vsel %vm306, %v284, 0
  %v371 = vsel %vm306, %v289, 0
  %v374 = vsel %vm306, %v294, 0
  %376 = vmatprep.subr.mxu0 0.0
  %377 = vmatpush1.msra.mxu0 0.0
  %378 = vmatprep.subr.mxu0 0.0
  %379 = vmatpush1.msra.mxu0 0.0
  %380 = vmatprep.subr.mxu0 0.0
  %381 = vmatpush1.msra.mxu0 0.0
  %382 = vmatprep.subr.mxu0 0.0
  %383 = vmatpush1.msra.mxu0 0.0
  %384 = vmatprep.subr.mxu0 0.0
  %385 = vmatpush1.msra.mxu0 0.0
  %386 = vmatprep.subr.mxu0 0.0
  %387 = vmatpush1.msra.mxu0 0.0
  %388 = vmatprep.subr.mxu0 0.0
  %389 = vmatpush1.msra.mxu0 0.0
  %390 = vmatprep.subr.mxu0 0.0
  %391 = vmatpush1.msra.mxu0 0.0
  %392 = vmatprep.subr.mxu0 0.0
  %393 = vmatpush1.msra.mxu0 0.0
  %394 = vmatprep.subr.mxu0 0.0
  %395 = vmatpush1.msra.mxu0 0.0
  %396 = vmatprep.subr.mxu0 0.0
  %397 = vmatpush1.msra.mxu0 0.0
  %398 = vmatprep.subr.mxu0 0.0
  %399 = vmatpush1.msra.mxu0 0.0
  %400 = vmatprep.subr.mxu0 0.0
  %401 = vmatpush1.msra.mxu0 %v300
  %402 = vmatprep.subr.mxu0 0.0
  %403 = vmatpush1.msra.mxu0 %v299
  %404 = vmatprep.subr.mxu0 0.0
  %405 = vmatpush1.msra.mxu0 %v298
  %406 = vmatprep.subr.mxu0 0.0
  %407 = vmatpush1.msra.mxu0 %v297
  %408 = vmatprep.subr.mxu0 0.0
  %409 = vmatpush2.msra.mxu0 0.0
  %410 = vmatprep.subr.mxu0 0.0
  %411 = vmatpush2.msra.mxu0 0.0
  %412 = vmatprep.subr.mxu0 0.0
  %413 = vmatpush2.msra.mxu0 0.0
  %414 = vmatprep.subr.mxu0 0.0
  %415 = vmatpush2.msra.mxu0 0.0
  %416 = vmatprep.subr.mxu0 0.0
  %417 = vmatpush2.msra.mxu0 0.0
  %418 = vmatprep.subr.mxu0 0.0
  %419 = vmatpush2.msra.mxu0 0.0
  %420 = vmatprep.subr.mxu0 0.0
  %421 = vmatpush2.msra.mxu0 0.0
  %422 = vmatprep.subr.mxu0 0.0
  %423 = vmatpush2.msra.mxu0 0.0
  %424 = vmatprep.subr.mxu0 0.0
  %425 = vmatpush2.msra.mxu0 0.0
  %426 = vmatprep.subr.mxu0 0.0
  %427 = vmatpush2.msra.mxu0 0.0
  %428 = vmatprep.subr.mxu0 0.0
  %429 = vmatpush2.msra.mxu0 0.0
  %430 = vmatprep.subr.mxu0 0.0
  %431 = vmatpush2.msra.mxu0 0.0
  %432 = vmatprep.subr.mxu0 0.0
  %433 = vmatpush2.msra.mxu0 0.0
  %434 = vmatprep.subr.mxu0 0.0
  %435 = vmatpush2.msra.mxu0 0.0
  %436 = vmatprep.subr.mxu0 0.0
  %437 = vmatpush2.msra.mxu0 0.0
  %438 = vmatprep.subr.mxu0 0.0
  %439 = vmatpush2.msra.mxu0 0.0
  %440 = vmatprep.mubr.f32.mxu0 0.0
  %441 = vmatmul.mubr.f32.gmra.mxu0 %v308
  %v442 = vpop.f32.mrf.mxu0
  %v443 = vadd.f32 %v305, %v442
  %v444 = vpop.f32.mrf.mxu0
  %445 = vmatprep.mubr.f32.mxu0 0.0
  %446 = vmatmul.mubr.f32.gmra.mxu0 %v311
  %v447 = vpop.f32.mrf.mxu0
  %v448 = vadd.f32 %v305, %v447
  %v449 = vpop.f32.mrf.mxu0
  %450 = vmatprep.mubr.f32.mxu0 0.0
  %451 = vmatmul.mubr.f32.gmra.mxu0 %v314
  %v452 = vpop.f32.mrf.mxu0
  %v453 = vadd.f32 %v305, %v452
  %v454 = vpop.f32.mrf.mxu0
  %455 = vmatprep.mubr.f32.mxu0 0.0
  %456 = vmatmul.mubr.f32.gmra.mxu0 %v317
  %v457 = vpop.f32.mrf.mxu0
  %v458 = vadd.f32 %v305, %v457
  %v459 = vpop.f32.mrf.mxu0
  %460 = vmatprep.mubr.f32.mxu0 0.0
  %461 = vmatmul.mubr.f32.gmra.mxu0 %v320
  %v462 = vpop.f32.mrf.mxu0
  %v463 = vadd.f32 %v305, %v462
  %v464 = vpop.f32.mrf.mxu0
  %465 = vmatprep.mubr.f32.mxu0 0.0
  %466 = vmatmul.mubr.f32.gmra.mxu0 %v323
  %v467 = vpop.f32.mrf.mxu0
  %v468 = vadd.f32 %v305, %v467
  %v469 = vpop.f32.mrf.mxu0
  %470 = vmatprep.mubr.f32.mxu0 0.0
  %471 = vmatmul.mubr.f32.gmra.mxu0 %v326
  %v472 = vpop.f32.mrf.mxu0
  %v473 = vadd.f32 %v305, %v472
  %v474 = vpop.f32.mrf.mxu0
  %475 = vmatprep.mubr.f32.mxu0 0.0
  %476 = vmatmul.mubr.f32.gmra.mxu0 %v329
  %v477 = vpop.f32.mrf.mxu0
  %v478 = vadd.f32 %v305, %v477
  %v479 = vpop.f32.mrf.mxu0
  %480 = vmatprep.mubr.f32.mxu0 0.0
  %481 = vmatmul.mubr.f32.gmra.mxu0 %v332
  %v482 = vpop.f32.mrf.mxu0
  %v483 = vadd.f32 %v305, %v482
  %v484 = vpop.f32.mrf.mxu0
  %485 = vmatprep.mubr.f32.mxu0 0.0
  %486 = vmatmul.mubr.f32.gmra.mxu0 %v335
  %v487 = vpop.f32.mrf.mxu0
  %v488 = vadd.f32 %v305, %v487
  %v489 = vpop.f32.mrf.mxu0
  %490 = vmatprep.mubr.f32.mxu0 0.0
  %491 = vmatmul.mubr.f32.gmra.mxu0 %v338
  %v492 = vpop.f32.mrf.mxu0
  %v493 = vadd.f32 %v305, %v492
  %v494 = vpop.f32.mrf.mxu0
  %495 = vmatprep.mubr.f32.mxu0 0.0
  %496 = vmatmul.mubr.f32.gmra.mxu0 %v341
  %v497 = vpop.f32.mrf.mxu0
  %v498 = vadd.f32 %v305, %v497
  %v499 = vpop.f32.mrf.mxu0
  %500 = vmatprep.mubr.f32.mxu0 0.0
  %501 = vmatmul.mubr.f32.gmra.mxu0 %v344
  %v502 = vpop.f32.mrf.mxu0
  %v503 = vadd.f32 %v305, %v502
  %v504 = vpop.f32.mrf.mxu0
  %505 = vmatprep.mubr.f32.mxu0 0.0
  %506 = vmatmul.mubr.f32.gmra.mxu0 %v347
  %v507 = vpop.f32.mrf.mxu0
  %v508 = vadd.f32 %v305, %v507
  %v509 = vpop.f32.mrf.mxu0
  %510 = vmatprep.mubr.f32.mxu0 0.0
  %511 = vmatmul.mubr.f32.gmra.mxu0 %v350
  %v512 = vpop.f32.mrf.mxu0
  %v513 = vadd.f32 %v305, %v512
  %v514 = vpop.f32.mrf.mxu0
  %515 = vmatprep.mubr.f32.mxu0 0.0
  %516 = vmatmul.mubr.f32.gmra.mxu0 %v353
  %v517 = vpop.f32.mrf.mxu0
  %v518 = vadd.f32 %v305, %v517
  %v519 = vpop.f32.mrf.mxu0
  %520 = vmatprep.mubr.f32.mxu0 0.0
  %521 = vmatmul.mubr.f32.gmra.mxu0 %v356
  %v522 = vpop.f32.mrf.mxu0
  %v523 = vadd.f32 %v305, %v522
  %v524 = vpop.f32.mrf.mxu0
  %525 = vmatprep.mubr.f32.mxu0 0.0
  %526 = vmatmul.mubr.f32.gmra.mxu0 %v359
  %v527 = vpop.f32.mrf.mxu0
  %v528 = vadd.f32 %v305, %v527
  %v529 = vpop.f32.mrf.mxu0
  %530 = vmatprep.mubr.f32.mxu0 0.0
  %531 = vmatmul.mubr.f32.gmra.mxu0 %v362
  %v532 = vpop.f32.mrf.mxu0
  %v533 = vadd.f32 %v305, %v532
  %v534 = vpop.f32.mrf.mxu0
  %535 = vmatprep.mubr.f32.mxu0 0.0
  %536 = vmatmul.mubr.f32.gmra.mxu0 %v365
  %v537 = vpop.f32.mrf.mxu0
  %v538 = vadd.f32 %v305, %v537
  %v539 = vpop.f32.mrf.mxu0
  %540 = vmatprep.mubr.f32.mxu0 0.0
  %541 = vmatmul.mubr.f32.gmra.mxu0 %v368
  %v542 = vpop.f32.mrf.mxu0
  %v543 = vadd.f32 %v305, %v542
  %v544 = vpop.f32.mrf.mxu0
  %545 = vmatprep.mubr.f32.mxu0 0.0
  %546 = vmatmul.mubr.f32.gmra.mxu0 %v371
  %v547 = vpop.f32.mrf.mxu0
  %v548 = vadd.f32 %v305, %v547
  %v549 = vpop.f32.mrf.mxu0
  %550 = vmatprep.mubr.f32.mxu0 0.0
  %551 = vmatmul.mubr.f32.gmra.mxu0 %v374
  %v552 = vpop.f32.mrf.mxu0
  %v553 = vadd.f32 %v305, %v552
  %v554 = vpop.f32.mrf.mxu0
  %555 = vdwg.mxu0
  %556 = vst.msk [vmem:[%s3] sm:$0xff] %vm306, %v443
  %557 = vst.msk [vmem:[%s3 + $0x8] sm:$0xff] %vm306, %v448
  %558 = vst.msk [vmem:[%s3 + $0x10] sm:$0xff] %vm306, %v453
  %559 = vst.msk [vmem:[%s3 + $0x18] sm:$0xff] %vm306, %v458
  %560 = vst.msk [vmem:[%s3 + $0x20] sm:$0xff] %vm306, %v463
  %561 = vst.msk [vmem:[%s3 + $0x28] sm:$0xff] %vm306, %v468
  %562 = vst.msk [vmem:[%s3 + $0x30] sm:$0xff] %vm306, %v473
  %563 = vst.msk [vmem:[%s3 + $0x38] sm:$0xff] %vm306, %v478
  %564 = vst.msk [vmem:[%s3 + $0x40] sm:$0xff] %vm306, %v483
  %565 = vst.msk [vmem:[%s3 + $0x48] sm:$0xff] %vm306, %v488
  %566 = vst.msk [vmem:[%s3 + $0x50] sm:$0xff] %vm306, %v493
  %567 = vst.msk [vmem:[%s3 + $0x58] sm:$0xff] %vm306, %v498
  %568 = vst.msk [vmem:[%s3 + $0x60] sm:$0xff] %vm306, %v503
  %569 = vst.msk [vmem:[%s3 + $0x68] sm:$0xff] %vm306, %v508
  %570 = vst.msk [vmem:[%s3 + $0x70] sm:$0xff] %vm306, %v513
  %571 = vst.msk [vmem:[%s3 + $0x78] sm:$0xff] %vm306, %v518
  %572 = vst.msk [vmem:[%s3 + $0x80] sm:$0xff] %vm306, %v523
  %573 = vst.msk [vmem:[%s3 + $0x88] sm:$0xff] %vm306, %v528
  %574 = vst.msk [vmem:[%s3 + $0x90] sm:$0xff] %vm306, %v533
  %575 = vst.msk [vmem:[%s3 + $0x98] sm:$0xff] %vm306, %v538
  %576 = vst.msk [vmem:[%s3 + $0xa0] sm:$0xff] %vm306, %v543
  %577 = vst.msk [vmem:[%s3 + $0xa8] sm:$0xff] %vm306, %v548
  %578 = vst.msk [vmem:[%s3 + $0xb0] sm:$0xff] %vm306, %v553
  %v579 = vld [vmem:[%s1 + $0x40] sm:$0xff]
  %v580 = vld [vmem:[%s1 + $0x48] sm:$0xff]
  %v581 = vld [vmem:[%s1 + $0x50] sm:$0xff]
  %v582 = vld [vmem:[%s1 + $0x58] sm:$0xff]
  %v583 = vld [vmem:[%s1 + $0x60] sm:$0xff]
  %v584 = vld [vmem:[%s1 + $0x68] sm:$0xff]
  %v585 = vld [vmem:[%s1 + $0x70] sm:$0xff]
  %v586 = vld [vmem:[%s1 + $0x78] sm:$0xff]
  %v587 = vld [vmem:[%s1 + $0x80] sm:$0xff]
  %v588 = vld [vmem:[%s1 + $0x88] sm:$0xff]
  %v589 = vld [vmem:[%s1 + $0x90] sm:$0xff]
  %v590 = vld [vmem:[%s1 + $0x98] sm:$0xff]
  %v591 = vld [vmem:[%s1 + $0xa0] sm:$0xff]
  %v592 = vld [vmem:[%s1 + $0xa8] sm:$0xff]
  %v593 = vld [vmem:[%s1 + $0xb0] sm:$0xff]
  %v594 = vld [vmem:[%s1 + $0xb8] sm:$0xff]
  %v595 = vld [vmem:[%s1 + $0xc0] sm:$0xff]
  %v596 = vld [vmem:[%s1 + $0xc8] sm:$0xff]
  %v597 = vld [vmem:[%s1 + $0xd0] sm:$0xff]
  %v598 = vld [vmem:[%s1 + $0xd8] sm:$0xff]
  %v599 = vld [vmem:[%s1 + $0xe0] sm:$0xff]
  %v600 = vld [vmem:[%s1 + $0xe8] sm:$0xff]
  %v601 = vld [vmem:[%s1 + $0xf0] sm:$0xff]
  %v602 = vmul.f32 %v443, %v579
  %v603 = vmul.f32 %v448, %v580
  %v604 = vmul.f32 %v453, %v581
  %v605 = vmul.f32 %v458, %v582
  %v606 = vmul.f32 %v463, %v583
  %v607 = vmul.f32 %v468, %v584
  %v608 = vmul.f32 %v473, %v585
  %v609 = vmul.f32 %v478, %v586
  %v610 = vmul.f32 %v483, %v587
  %v611 = vmul.f32 %v488, %v588
  %v612 = vmul.f32 %v493, %v589
  %v613 = vmul.f32 %v498, %v590
  %v614 = vmul.f32 %v503, %v591
  %v615 = vmul.f32 %v508, %v592
  %v616 = vmul.f32 %v513, %v593
  %v617 = vmul.f32 %v518, %v594
  %v618 = vmul.f32 %v523, %v595
  %v619 = vmul.f32 %v528, %v596
  %v620 = vmul.f32 %v533, %v597
  %v621 = vmul.f32 %v538, %v598
  %v622 = vmul.f32 %v543, %v599
  %v623 = vmul.f32 %v548, %v600
  %v624 = vmul.f32 %v553, %v601
  %v625 = vsel %vm306, %v602, 0.0
  %626 = vadd.xlane.f32.xlu0 %v625
  %v627 = vpop.xlane.xlu0 %626
  %v628 = vsel %vm306, %v603, 0.0
  %629 = vadd.xlane.f32.xlu0 %v628
  %v630 = vpop.xlane.xlu0 %629
  %v631 = vsel %vm306, %v604, 0.0
  %632 = vadd.xlane.f32.xlu0 %v631
  %v633 = vpop.xlane.xlu0 %632
  %v634 = vsel %vm306, %v605, 0.0
  %635 = vadd.xlane.f32.xlu0 %v634
  %v636 = vpop.xlane.xlu0 %635
  %v637 = vsel %vm306, %v606, 0.0
  %638 = vadd.xlane.f32.xlu0 %v637
  %v639 = vpop.xlane.xlu0 %638
  %v640 = vsel %vm306, %v607, 0.0
  %641 = vadd.xlane.f32.xlu0 %v640
  %v642 = vpop.xlane.xlu0 %641
  %v643 = vsel %vm306, %v608, 0.0
  %644 = vadd.xlane.f32.xlu0 %v643
  %v645 = vpop.xlane.xlu0 %644
  %v646 = vsel %vm306, %v609, 0.0
  %647 = vadd.xlane.f32.xlu0 %v646
  %v648 = vpop.xlane.xlu0 %647
  %v649 = vsel %vm306, %v610, 0.0
  %650 = vadd.xlane.f32.xlu0 %v649
  %v651 = vpop.xlane.xlu0 %650
  %v652 = vsel %vm306, %v611, 0.0
  %653 = vadd.xlane.f32.xlu0 %v652
  %v654 = vpop.xlane.xlu0 %653
  %v655 = vsel %vm306, %v612, 0.0
  %656 = vadd.xlane.f32.xlu0 %v655
  %v657 = vpop.xlane.xlu0 %656
  %v658 = vsel %vm306, %v613, 0.0
  %659 = vadd.xlane.f32.xlu0 %v658
  %v660 = vpop.xlane.xlu0 %659
  %v661 = vsel %vm306, %v614, 0.0
  %662 = vadd.xlane.f32.xlu0 %v661
  %v663 = vpop.xlane.xlu0 %662
  %v664 = vsel %vm306, %v615, 0.0
  %665 = vadd.xlane.f32.xlu0 %v664
  %v666 = vpop.xlane.xlu0 %665
  %v667 = vsel %vm306, %v616, 0.0
  %668 = vadd.xlane.f32.xlu0 %v667
  %v669 = vpop.xlane.xlu0 %668
  %v670 = vsel %vm306, %v617, 0.0
  %671 = vadd.xlane.f32.xlu0 %v670
  %v672 = vpop.xlane.xlu0 %671
  %v673 = vsel %vm306, %v618, 0.0
  %674 = vadd.xlane.f32.xlu0 %v673
  %v675 = vpop.xlane.xlu0 %674
  %v676 = vsel %vm306, %v619, 0.0
  %677 = vadd.xlane.f32.xlu0 %v676
  %v678 = vpop.xlane.xlu0 %677
  %v679 = vsel %vm306, %v620, 0.0
  %680 = vadd.xlane.f32.xlu0 %v679
  %v681 = vpop.xlane.xlu0 %680
  %v682 = vsel %vm306, %v621, 0.0
  %683 = vadd.xlane.f32.xlu0 %v682
  %v684 = vpop.xlane.xlu0 %683
  %v685 = vsel %vm306, %v622, 0.0
  %686 = vadd.xlane.f32.xlu0 %v685
  %v687 = vpop.xlane.xlu0 %686
  %v688 = vsel %vm306, %v623, 0.0
  %689 = vadd.xlane.f32.xlu0 %v688
  %v690 = vpop.xlane.xlu0 %689
  %v691 = vsel %vm306, %v624, 0.0
  %692 = vadd.xlane.f32.xlu0 %v691
  %v693 = vpop.xlane.xlu0 %692
  %v694 = vadd.f32 %v627, %v579
  %v695 = vadd.f32 %v630, %v580
  %v696 = vadd.f32 %v633, %v581
  %v697 = vadd.f32 %v636, %v582
  %v698 = vadd.f32 %v639, %v583
  %v699 = vadd.f32 %v642, %v584
  %v700 = vadd.f32 %v645, %v585
  %v701 = vadd.f32 %v648, %v586
  %v702 = vadd.f32 %v651, %v587
  %v703 = vadd.f32 %v654, %v588
  %v704 = vadd.f32 %v657, %v589
  %v705 = vadd.f32 %v660, %v590
  %v706 = vadd.f32 %v663, %v591
  %v707 = vadd.f32 %v666, %v592
  %v708 = vadd.f32 %v669, %v593
  %v709 = vadd.f32 %v672, %v594
  %v710 = vadd.f32 %v675, %v595
  %v711 = vadd.f32 %v678, %v596
  %v712 = vadd.f32 %v681, %v597
  %v713 = vadd.f32 %v684, %v598
  %v714 = vadd.f32 %v687, %v599
  %v715 = vadd.f32 %v690, %v600
  %v716 = vadd.f32 %v693, %v601
  %740 = vrot.lane.b32.xlu0 %v694, 96
  %v741 = vpop.permute.xlu0 %740
  %742 = vrot.lane.b32.xlu0 %v695, 96
  %v743 = vpop.permute.xlu0 %742
  %744 = vrot.lane.b32.xlu0 %v696, 96
  %v745 = vpop.permute.xlu0 %744
  %746 = vrot.lane.b32.xlu0 %v697, 96
  %v747 = vpop.permute.xlu0 %746
  %748 = vrot.lane.b32.xlu0 %v698, 96
  %v749 = vpop.permute.xlu0 %748
  %750 = vrot.lane.b32.xlu0 %v699, 96
  %v751 = vpop.permute.xlu0 %750
  %752 = vrot.lane.b32.xlu0 %v700, 96
  %v753 = vpop.permute.xlu0 %752
  %754 = vrot.lane.b32.xlu0 %v701, 96
  %v755 = vpop.permute.xlu0 %754
  %756 = vrot.lane.b32.xlu0 %v702, 96
  %v757 = vpop.permute.xlu0 %756
  %758 = vrot.lane.b32.xlu0 %v703, 96
  %v759 = vpop.permute.xlu0 %758
  %760 = vrot.lane.b32.xlu0 %v704, 96
  %v761 = vpop.permute.xlu0 %760
  %762 = vrot.lane.b32.xlu0 %v705, 96
  %v763 = vpop.permute.xlu0 %762
  %764 = vrot.lane.b32.xlu0 %v706, 96
  %v765 = vpop.permute.xlu0 %764
  %766 = vrot.lane.b32.xlu0 %v707, 96
  %v767 = vpop.permute.xlu0 %766
  %768 = vrot.lane.b32.xlu0 %v708, 96
  %v769 = vpop.permute.xlu0 %768
  %770 = vrot.lane.b32.xlu0 %v709, 96
  %v771 = vpop.permute.xlu0 %770
  %772 = vrot.lane.b32.xlu0 %v710, 96
  %v773 = vpop.permute.xlu0 %772
  %774 = vrot.lane.b32.xlu0 %v711, 96
  %v775 = vpop.permute.xlu0 %774
  %776 = vrot.lane.b32.xlu0 %v712, 96
  %v777 = vpop.permute.xlu0 %776
  %778 = vrot.lane.b32.xlu0 %v713, 96
  %v779 = vpop.permute.xlu0 %778
  %780 = vrot.lane.b32.xlu0 %v714, 96
  %v781 = vpop.permute.xlu0 %780
  %782 = vrot.lane.b32.xlu0 %v715, 96
  %v783 = vpop.permute.xlu0 %782
  %784 = vrot.lane.b32.xlu0 %v716, 96
  %v785 = vpop.permute.xlu0 %784
  %vm809 = vcmask 7168
  %810 = vst.msk [vmem:[%s2] sm:$0xff] %vm809, %v741
  %811 = vst.msk [vmem:[%s2 + $0x8] sm:$0xff] %vm809, %v743
  %812 = vst.msk [vmem:[%s2 + $0x10] sm:$0xff] %vm809, %v745
  %813 = vst.msk [vmem:[%s2 + $0x18] sm:$0xff] %vm809, %v747
  %814 = vst.msk [vmem:[%s2 + $0x20] sm:$0xff] %vm809, %v749
  %815 = vst.msk [vmem:[%s2 + $0x28] sm:$0xff] %vm809, %v751
  %816 = vst.msk [vmem:[%s2 + $0x30] sm:$0xff] %vm809, %v753
  %817 = vst.msk [vmem:[%s2 + $0x38] sm:$0xff] %vm809, %v755
  %818 = vst.msk [vmem:[%s2 + $0x40] sm:$0xff] %vm809, %v757
  %819 = vst.msk [vmem:[%s2 + $0x48] sm:$0xff] %vm809, %v759
  %820 = vst.msk [vmem:[%s2 + $0x50] sm:$0xff] %vm809, %v761
  %821 = vst.msk [vmem:[%s2 + $0x58] sm:$0xff] %vm809, %v763
  %822 = vst.msk [vmem:[%s2 + $0x60] sm:$0xff] %vm809, %v765
  %823 = vst.msk [vmem:[%s2 + $0x68] sm:$0xff] %vm809, %v767
  %824 = vst.msk [vmem:[%s2 + $0x70] sm:$0xff] %vm809, %v769
  %825 = vst.msk [vmem:[%s2 + $0x78] sm:$0xff] %vm809, %v771
  %826 = vst.msk [vmem:[%s2 + $0x80] sm:$0xff] %vm809, %v773
  %827 = vst.msk [vmem:[%s2 + $0x88] sm:$0xff] %vm809, %v775
  %828 = vst.msk [vmem:[%s2 + $0x90] sm:$0xff] %vm809, %v777
  %829 = vst.msk [vmem:[%s2 + $0x98] sm:$0xff] %vm809, %v779
  %830 = vst.msk [vmem:[%s2 + $0xa0] sm:$0xff] %vm809, %v781
  %831 = vst.msk [vmem:[%s2 + $0xa8] sm:$0xff] %vm809, %v783
  %832 = vst.msk [vmem:[%s2 + $0xb0] sm:$0xff] %vm809, %v785
  // Predicated region
  $region10: #{tpu_custom_call.1} parent=0 // pred_check
    _
  $region11: #{tpu_custom_call.1} parent=0 // pred_check_branch
    %834 = sbr.rel (0) target = $region13
  $region12: #{tpu_custom_call.1} parent=0 // pred_region
    _
  $region13: #{tpu_custom_call.1} parent=0 // pred_fallthru
    _
  // Predicated region
  $region14: #{tpu_custom_call.1} parent=0 // pred_check
    _
  $region15: #{tpu_custom_call.1} parent=0 // pred_check_branch
    %836 = sbr.rel (0) target = $region17
  $region16: #{tpu_custom_call.1} parent=0 // pred_region
    _
  $region17: #{tpu_custom_call.1} parent=0 // pred_fallthru
    _
  // Predicated region
  $region18: #{tpu_custom_call.1} parent=0 // pred_check
    _
  $region19: #{tpu_custom_call.1} parent=0 // pred_check_branch
    %838 = sbr.rel (0) target = $region21
  $region20: #{tpu_custom_call.1} parent=0 // pred_region
    _
  $region21: #{tpu_custom_call.1} parent=0 // pred_fallthru
    _
  // Predicated region
  $region22: #{tpu_custom_call.1} parent=0 // pred_check
    _
  $region23: #{tpu_custom_call.1} parent=0 // pred_check_branch
    %840 = sbr.rel (0) target = $region25
  $region24: #{tpu_custom_call.1} parent=0 // pred_region
    _
  $region25: #{tpu_custom_call.1} parent=0 // pred_fallthru
    _

</llo_original>
